<compile_context>
chip_gen: v7x
topology: tpu7x:2x2x1
jax: 0.10.0
libtpu: 0.0.40
codegen_flags: <defaults>
</compile_context>

<pallas_src>
import functools
import math

import jax
import jax.numpy as jnp
from jax.experimental import pallas as pl
from jax.experimental.pallas import tpu as pltpu

_LOG_2PI = math.log(2.0 * math.pi)


def _sf_kernel(fm_ref, flv_ref, fs_ref, ef_ref, cf_ref, *, dim_f):
    """Time-invariant factor: E_f = exp(Sf - rowmax(Sf)), c_f = log(sum_j E_f).

    Sf[i,j] is built with a single fused MXU matmul via the expansion
    (s - m)^2 * w = s^2*w - 2*s*(m*w) + m^2*w with w = exp(-2*logvar).
    """
    fm = fm_ref[...]                       # (B, Df)
    flv = flv_ref[...]                     # (B, Df)
    fs = fs_ref[...]                       # (B, Df)

    w = jnp.exp(-2.0 * flv)                                   # (B, Df)
    lhs = jnp.concatenate([fs * fs, fs], axis=-1)             # (B, 2Df)
    rhs = jnp.concatenate([w, -2.0 * (fm * w)], axis=-1)      # (B, 2Df)
    quad = jnp.einsum('id,jd->ij', lhs, rhs,
                      preferred_element_type=jnp.float32)     # (B, B)
    cj = jnp.sum(fm * fm * w + 2.0 * flv, axis=-1) + dim_f * _LOG_2PI   # (B,)
    sf = -0.5 * (quad + cj[None, :])                          # (B, B)

    m_f = jnp.max(sf, axis=-1, keepdims=True)                 # (B, 1)
    ef = jnp.exp(sf - m_f)                                    # (B, B), in (0, 1]
    ef_ref[...] = ef
    cf_ref[...] = jnp.log(jnp.sum(ef, axis=-1, keepdims=True))  # (B, 1)


def _mi_kernel(ef_ref, cf_ref, zm_ref, zlv_ref, zs_ref, out_ref, *,
               log_bn, dim_z):
    """Per-time-chunk Sz + combined logsumexp, reduced over i inside the kernel.

    val[t,i] = lse_j(Sf+Sz) - lse_j(Sf) - lse_j(Sz) + log(B*num_train)
             = log(sum_j E_f*P) - log(sum_j P) - c_f + log_bn
    with P = exp(Sz - rowmax_j(Sz)); the rowmax shifts cancel exactly.
    """
    zm = zm_ref[...]                       # (Tt, B, Dz)
    zlv = zlv_ref[...]                     # (Tt, B, Dz)
    zs = zs_ref[...]                       # (Tt, B, Dz)

    w = jnp.exp(-2.0 * zlv)                                       # (Tt, B, Dz)
    lhs = jnp.concatenate([zs * zs, zs], axis=-1)                 # (Tt, B, 2Dz)
    rhs = jnp.concatenate([w, -2.0 * (zm * w)], axis=-1)          # (Tt, B, 2Dz)
    quad = jnp.einsum('tid,tjd->tij', lhs, rhs,
                      preferred_element_type=jnp.float32)         # (Tt, B, B)
    cj = jnp.sum(zm * zm * w + 2.0 * zlv, axis=-1) + dim_z * _LOG_2PI  # (Tt, B)
    sz = -0.5 * (quad + cj[:, None, :])                           # (Tt, B, B)

    m_z = jnp.max(sz, axis=-1, keepdims=True)                     # (Tt, B, 1)
    p = jnp.exp(sz - m_z)                 # single (Tt,B,B) EUP pass, in (0, 1]
    s_z = jnp.sum(p, axis=-1)                                     # (Tt, B), >= 1
    s_fz = jnp.sum(p * ef_ref[...][None, :, :], axis=-1)          # (Tt, B)

    # cf_ref is (1, B) (per-i), broadcast over the time-chunk axis.
    val = jnp.log(s_fz) - jnp.log(s_z) - cf_ref[...] + log_bn     # (Tt, B)

    # Per-t partial sums over i; the cheap mean finishes in JAX.
    out_ref[...] = jnp.sum(jnp.maximum(val, 0.0), axis=-1, keepdims=True)


def _pick_time_chunk(T, B, Dz, *, vmem_budget_bytes=24 << 20):
    """Largest time-chunk Tt that (a) divides T, (b) is a multiple of 8 or == T,
    (c) fits a VMEM budget, (d) leaves >= 2 grid steps when T >= 16 (v7x TCs)."""
    # Rough f32 bytes that scale with Tt: 3 double-buffered (B,Dz) input rows,
    # 2 (B,2Dz) matmul operands, ~4 live (B,B) intermediates.
    per_t = 4 * B * (14 * Dz + 4 * B)
    cap = max(8, vmem_budget_bytes // max(per_t, 1))
    if T >= 16:
        cap = min(cap, T // 2)          # >= 2 grid steps for v7x's two cores
    best = T                            # full-extent block is always legal
    for c in range(min(cap, T), 7, -1):
        if T % c == 0 and c % 8 == 0:
            best = c
            break
    return best


def mutual_information_pallas(f_dist, z_dist, num_train):
    f_mean, f_logvar, f_sample = (x.astype(jnp.float32) for x in f_dist)
    z_mean, z_logvar, z_sample = (x.astype(jnp.float32) for x in z_dist)
    B, T, Dz = z_mean.shape
    _, Df = f_mean.shape

    # --- Stage 1: time-invariant exp(Sf - rowmax) and log-sum (runs once). ---
    ef, cf = pl.pallas_call(
        functools.partial(_sf_kernel, dim_f=Df),
        out_shape=(jax.ShapeDtypeStruct((B, B), jnp.float32),
                   jax.ShapeDtypeStruct((B, 1), jnp.float32)),
    )(f_mean, f_logvar, f_sample)
    cf_row = cf.reshape(1, B)            # per-i row, broadcast over t in stage 2

    # Layout change (B,T,Dz)->(T,B,Dz) so each grid chunk is a (Tt,B,Dz) slab
    # with the time-chunk leading for the proven batched-MXU einsum pattern.
    zm = jnp.transpose(z_mean, (1, 0, 2))
    zlv = jnp.transpose(z_logvar, (1, 0, 2))
    zs = jnp.transpose(z_sample, (1, 0, 2))

    Tt = _pick_time_chunk(T, B, Dz)
    grid = (T // Tt,)
    log_bn = math.log(B * num_train)

    # --- Stage 2: per-time-chunk scores + combine, T axis parallel. ---
    row_sums = pl.pallas_call(
        functools.partial(_mi_kernel, log_bn=log_bn, dim_z=Dz),
        out_shape=jax.ShapeDtypeStruct((T, 1), jnp.float32),
        grid_spec=pltpu.PrefetchScalarGridSpec(
            num_scalar_prefetch=0,
            grid=grid,
            in_specs=[
                pl.BlockSpec((B, B), lambda c: (0, 0)),          # E_f
                pl.BlockSpec((1, B), lambda c: (0, 0)),          # c_f row
                pl.BlockSpec((Tt, B, Dz), lambda c: (c, 0, 0)),  # z_mean
                pl.BlockSpec((Tt, B, Dz), lambda c: (c, 0, 0)),  # z_logvar
                pl.BlockSpec((Tt, B, Dz), lambda c: (c, 0, 0)),  # z_sample
            ],
            out_specs=pl.BlockSpec((Tt, 1), lambda c: (c, 0)),   # per-t sums
        ),
        compiler_params=pltpu.CompilerParams(
            dimension_semantics=("parallel",),
            vmem_limit_bytes=48 << 20),
    )(ef, cf_row, zm, zlv, zs)

    return jnp.sum(row_sums) / (T * B)


def mutual_information_ref(f_dist, z_dist, num_train):
    """Pure-JAX reference mirroring the PyTorch module exactly."""
    f_mean, f_logvar, f_sample = f_dist
    z_mean, z_logvar, z_sample = z_dist
    B, T, Dz = z_mean.shape

    def logdens(mu, lv, s):
        inv = jnp.exp(-lv)
        tmp = (s - mu) * inv
        return -0.5 * (tmp * tmp + 2.0 * lv + _LOG_2PI)

    sf = jnp.sum(logdens(f_mean[None, :, :], f_logvar[None, :, :],
                         f_sample[:, None, :]), axis=-1)          # (B, B)
    zm = jnp.transpose(z_mean, (1, 0, 2))
    zlv = jnp.transpose(z_logvar, (1, 0, 2))
    zs = jnp.transpose(z_sample, (1, 0, 2))
    sz = jnp.sum(logdens(zm[:, None, :, :], zlv[:, None, :, :],
                         zs[:, :, None, :]), axis=-1)             # (T, B, B)

    log_bn = math.log(B * num_train)
    lse = lambda x: jax.scipy.special.logsumexp(x, axis=-1)
    logq_f = lse(sf)[None, :] - log_bn
    logq_z = lse(sz) - log_bn
    logq_fz = lse(sf[None, :, :] + sz) - log_bn
    return jnp.mean(jax.nn.relu(logq_fz - logq_f - logq_z))


if __name__ == "__main__":
    B, T, Df, Dz = 8, 8, 16, 16
    num_train = 100

    key = jax.random.PRNGKey(0)
    ks = jax.random.split(key, 6)
    f_mean = jax.random.normal(ks[0], (B, Df), jnp.float32)
    f_logvar = 0.1 * jax.random.normal(ks[1], (B, Df), jnp.float32)
    f_sample = f_mean + jnp.exp(f_logvar) * jax.random.normal(ks[2], (B, Df), jnp.float32)
    z_mean = jax.random.normal(ks[3], (B, T, Dz), jnp.float32)
    z_logvar = 0.1 * jax.random.normal(ks[4], (B, T, Dz), jnp.float32)
    z_sample = z_mean + jnp.exp(z_logvar) * jax.random.normal(ks[5], (B, T, Dz), jnp.float32)

    f_dist = (f_mean, f_logvar, f_sample)
    z_dist = (z_mean, z_logvar, z_sample)

    mi = jax.block_until_ready(mutual_information_pallas(f_dist, z_dist, num_train))
    mi_ref = jax.block_until_ready(mutual_information_ref(f_dist, z_dist, num_train))

    assert jnp.isfinite(mi), "kernel returned non-finite value"
    # f32 associativity differs (fused matmul / shifted logsumexp) -> 1e-3 tol.
    assert jnp.allclose(mi, mi_ref, atol=1e-3, rtol=1e-3), (mi, mi_ref)
    print("KERNEL_OK")
</pallas_src>

<mosaic_0001>
module attributes {stable_mosaic.version = 11 : i64} {
  func.func @_sf_kernel(%arg0: memref<8x16xf32, #tpu.memory_space<vmem>>, %arg1: memref<8x16xf32, #tpu.memory_space<vmem>>, %arg2: memref<8x16xf32, #tpu.memory_space<vmem>>, %arg3: memref<8x8xf32, #tpu.memory_space<vmem>>, %arg4: memref<8x1xf32, #tpu.memory_space<vmem>>) attributes {dimension_semantics = [], scalar_prefetch = 0 : i64, scratch_operands = 0 : i64, tpu.core_type = #tpu.core_type<tc>} {
    %c0 = arith.constant 0 : index
    %c0_0 = arith.constant 0 : index
    %0 = vector.load %arg0[%c0, %c0_0] : memref<8x16xf32, #tpu.memory_space<vmem>>, vector<8x16xf32>
    %c0_1 = arith.constant 0 : index
    %c0_2 = arith.constant 0 : index
    %1 = vector.load %arg1[%c0_1, %c0_2] : memref<8x16xf32, #tpu.memory_space<vmem>>, vector<8x16xf32>
    %c0_3 = arith.constant 0 : index
    %c0_4 = arith.constant 0 : index
    %2 = vector.load %arg2[%c0_3, %c0_4] : memref<8x16xf32, #tpu.memory_space<vmem>>, vector<8x16xf32>
    %cst = arith.constant -2.000000e+00 : f32
    %3 = vector.broadcast %cst : f32 to vector<8x16xf32>
    %4 = arith.mulf %3, %1 : vector<8x16xf32>
    %5 = math.exp %4 : vector<8x16xf32>
    %6 = arith.mulf %2, %2 : vector<8x16xf32>
    %7 = tpu.concatenate %6, %2 in 1 : vector<8x16xf32>, vector<8x16xf32> -> vector<8x32xf32>
    %8 = arith.mulf %0, %5 : vector<8x16xf32>
    %cst_5 = arith.constant -2.000000e+00 : f32
    %9 = vector.broadcast %cst_5 : f32 to vector<8x16xf32>
    %10 = arith.mulf %9, %8 : vector<8x16xf32>
    %11 = tpu.concatenate %5, %10 in 1 : vector<8x16xf32>, vector<8x16xf32> -> vector<8x32xf32>
    "tpu.trace_start"() <{level = 10 : i32, message = "id,jd->ij"}> : () -> ()
    %cst_6 = arith.constant dense<0.000000e+00> : vector<8x8xf32>
    %12 = tpu.matmul %7, %11, %cst_6 {dimension_numbers = #tpu.dot_dimension_numbers<[1], [1], [0], [0], [0, 0, 1, 0], [], []>} : vector<8x32xf32>, vector<8x32xf32>, vector<8x8xf32> -> vector<8x8xf32>
    "tpu.trace_stop"() : () -> ()
    %13 = arith.mulf %0, %0 : vector<8x16xf32>
    %14 = arith.mulf %13, %5 : vector<8x16xf32>
    %cst_7 = arith.constant 2.000000e+00 : f32
    %15 = vector.broadcast %cst_7 : f32 to vector<8x16xf32>
    %16 = arith.mulf %15, %1 : vector<8x16xf32>
    %17 = arith.addf %14, %16 : vector<8x16xf32>
    %cst_8 = arith.constant dense<0.000000e+00> : vector<8xf32>
    %18 = vector.multi_reduction <add>, %17, %cst_8 [1] : vector<8x16xf32> to vector<8xf32>
    %cst_9 = arith.constant 29.4060326 : f32
    %19 = vector.broadcast %cst_9 : f32 to vector<8xf32>
    %20 = arith.addf %18, %19 : vector<8xf32>
    %21 = vector.shape_cast %20 : vector<8xf32> to vector<1x8xf32>
    %22 = vector.broadcast %21 : vector<1x8xf32> to vector<8x8xf32>
    %23 = arith.addf %12, %22 : vector<8x8xf32>
    %cst_10 = arith.constant -5.000000e-01 : f32
    %24 = vector.broadcast %cst_10 : f32 to vector<8x8xf32>
    %25 = arith.mulf %24, %23 : vector<8x8xf32>
    %cst_11 = arith.constant dense<0xFF800000> : vector<8xf32>
    %26 = vector.multi_reduction <maximumf>, %25, %cst_11 [1] : vector<8x8xf32> to vector<8xf32>
    %27 = vector.shape_cast %26 : vector<8xf32> to vector<8x1xf32>
    %28 = vector.broadcast %27 : vector<8x1xf32> to vector<8x8xf32>
    %29 = arith.subf %25, %28 : vector<8x8xf32>
    %30 = math.exp %29 : vector<8x8xf32>
    %c0_12 = arith.constant 0 : index
    %c0_13 = arith.constant 0 : index
    %31 = vector.load %arg3[%c0_12, %c0_13] : memref<8x8xf32, #tpu.memory_space<vmem>>, vector<8x8xf32>
    tpu.vector_store %arg3[%c0_12, %c0_13], %30 {strides = array<i32>} : memref<8x8xf32, #tpu.memory_space<vmem>>, vector<8x8xf32>,
    %cst_14 = arith.constant dense<0.000000e+00> : vector<8xf32>
    %32 = vector.multi_reduction <add>, %30, %cst_14 [1] : vector<8x8xf32> to vector<8xf32>
    %33 = vector.shape_cast %32 : vector<8xf32> to vector<8x1xf32>
    %34 = math.log %33 : vector<8x1xf32>
    %c0_15 = arith.constant 0 : index
    %c0_16 = arith.constant 0 : index
    %35 = vector.load %arg4[%c0_15, %c0_16] : memref<8x1xf32, #tpu.memory_space<vmem>>, vector<8x1xf32>
    tpu.vector_store %arg4[%c0_15, %c0_16], %34 {strides = array<i32>} : memref<8x1xf32, #tpu.memory_space<vmem>>, vector<8x1xf32>,
    return
  }
}

</mosaic_0001>

<llo_original>
// kernel: tpu_custom_call.1
$region0: #{tpu_custom_call.1}
  #allocation0 [shape = 'u32[]', space=smem, size = 0x4, offset = 0x4, fixed_abs, tag = 'smem constant byte address 0x4 - core index']
  #allocation1 [shape = 'u32[144,128]{1,0:T(1,128)}', space=vmem, size = 0x12000, scoped, tag = 'internal scratch']
  %s0 = inlined_call_operand.hbm [shape: f32[8,16], index: 0, kind: input, shape index: {}]
  %s1 = inlined_call_operand.hbm [shape: f32[8,16], index: 1, kind: input, shape index: {}]
  %s2 = inlined_call_operand.hbm [shape: f32[8,16], index: 2, kind: input, shape index: {}]
  %s3 = inlined_call_operand.hbm [shape: f32[8,8], index: 3, kind: output, shape index: {0}]
  %s4 = inlined_call_operand.vmem [shape: f32[8,1], index: 4, kind: output, shape index: {1}]
  %5 = xla_tuple %s3, %s4
  %s6 = sld [smem:[#allocation0]]
  $region42: #{tpu_custom_call.1} parent=0
    _
  %s8 = ssub.s32 1, %s6
  %s9 = scalar_select 0, %s8, %s6
  $region1: #{tpu_custom_call.1} parent=0
    #allocation2 [shape = 'u8[4096]{0}', space=vmem, size = 0x1000, scoped, tag = 'input window, operand 0, single buffered']
    #allocation3 [shape = 's32[1]{0}', space=sflag, size = 0x4, scoped, tag = 'scoped memory for tpu_custom_call.1']
    #allocation4 [shape = 's32[1]{0}', space=sflag, size = 0x4, scoped, tag = 'scoped memory for tpu_custom_call.1']
    #allocation5 [shape = 'u8[4096]{0}', space=vmem, size = 0x1000, scoped, tag = 'input window, operand 1, single buffered']
    #allocation6 [shape = 's32[1]{0}', space=sflag, size = 0x4, scoped, tag = 'scoped memory for tpu_custom_call.1']
    #allocation7 [shape = 'u8[4096]{0}', space=vmem, size = 0x1000, scoped, tag = 'input window, operand 2, single buffered']
    #allocation8 [shape = 'u8[4096]{0}', space=vmem, size = 0x1000, scoped, tag = 'output window, operand 0, single buffered']
    %10 = vsyncpa [#allocation3], 0
    %11 = vsyncpa [#allocation6], 0
    %12 = vsyncpa [#allocation4], 0
    // Predicated region
    $region2: #{tpu_custom_call.1} parent=1 // pred_check
      _
    $region3: #{tpu_custom_call.1} parent=1 // pred_check_branch
      %14 = sbr.rel (0) target = $region5
    $region4: #{tpu_custom_call.1} parent=1 // pred_region
      %s16 = ssub.s32 128, 128
      %17 = vsyncadd [#allocation3], %s16
      %s19 = sshll.u32 [#allocation2], 4
      %s20 = int_to_ptr.vmem [resolvable:$true] %s19
      %22 = dma.hbm_to_vmem [thread:$0]  %s0, 128, %s20, [#allocation3]
    $region5: #{tpu_custom_call.1} parent=1 // pred_fallthru
      _
    // Predicated region
    $region6: #{tpu_custom_call.1} parent=1 // pred_check
      _
    $region7: #{tpu_custom_call.1} parent=1 // pred_check_branch
      %24 = sbr.rel (0) target = $region9
    $region8: #{tpu_custom_call.1} parent=1 // pred_region
      %s26 = ssub.s32 128, 128
      %27 = vsyncadd [#allocation6], %s26
      %s29 = sshll.u32 [#allocation5], 4
      %s30 = int_to_ptr.vmem [resolvable:$true] %s29
      %32 = dma.hbm_to_vmem [thread:$0]  %s1, 128, %s30, [#allocation6]
    $region9: #{tpu_custom_call.1} parent=1 // pred_fallthru
      _
    // Predicated region
    $region10: #{tpu_custom_call.1} parent=1 // pred_check
      _
    $region11: #{tpu_custom_call.1} parent=1 // pred_check_branch
      %34 = sbr.rel (0) target = $region13
    $region12: #{tpu_custom_call.1} parent=1 // pred_region
      %s36 = ssub.s32 128, 128
      %37 = vsyncadd [#allocation6], %s36
      %s39 = sshll.u32 [#allocation7], 4
      %s40 = int_to_ptr.vmem [resolvable:$true] %s39
      %42 = dma.hbm_to_vmem [thread:$0]  %s2, 128, %s40, [#allocation6]
    $region13: #{tpu_custom_call.1} parent=1 // pred_fallthru
      _
    // Predicated region
    $region14: #{tpu_custom_call.1} parent=1 // pred_check
      _
    $region15: #{tpu_custom_call.1} parent=1 // pred_check_branch
      %44 = sbr.rel (0) target = $region17
    $region16: #{tpu_custom_call.1} parent=1 // pred_region
      %45 = dma.done [#allocation3], 128
    $region17: #{tpu_custom_call.1} parent=1 // pred_fallthru
      _
    // Predicated region
    $region18: #{tpu_custom_call.1} parent=1 // pred_check
      _
    $region19: #{tpu_custom_call.1} parent=1 // pred_check_branch
      %47 = sbr.rel (0) target = $region21
    $region20: #{tpu_custom_call.1} parent=1 // pred_region
      %48 = dma.done [#allocation6], 128
    $region21: #{tpu_custom_call.1} parent=1 // pred_fallthru
      _
    // Predicated region
    $region22: #{tpu_custom_call.1} parent=1 // pred_check
      _
    $region23: #{tpu_custom_call.1} parent=1 // pred_check_branch
      %50 = sbr.rel (0) target = $region25
    $region24: #{tpu_custom_call.1} parent=1 // pred_region
      %51 = dma.done [#allocation6], 128
    $region25: #{tpu_custom_call.1} parent=1 // pred_fallthru
      _
    %v52 = vld [vmem:[#allocation2] sm:$0xff]
    %v53 = vld [vmem:[#allocation5] sm:$0xff]
    %v54 = vld [vmem:[#allocation7] sm:$0xff]
    %v55 = vmul.f32 %v53, -2.0
    %v56 = vmul.f32 %v55, 1.442695
    %v57 = vpow.pop %v56
    %v58 = vmul.f32 %v54, %v54
    %60 = vrot.lane.b32.xlu0 %v54, 16
    %v61 = vpop.permute.xlu0 %60
    %vm63 = vcmask 130048
    %v64 = vsel %vm63, %v58, %v61
    %v65 = vmul.f32 %v52, %v57
    %v66 = vmul.f32 %v65, -2.0
    %68 = vrot.lane.b32.xlu0 %v66, 16
    %v69 = vpop.permute.xlu0 %68
    %v71 = vsel %vm63, %v57, %v69
    %v72 = vmul.f32 %v52, %v52
    %v73 = vmul.f32 %v72, %v57
    %v74 = vmul.f32 %v53, 2.0
    %v75 = vadd.f32 %v73, %v74
    %v76 = vsel %vm63, %v75, 0.0
    %77 = vadd.xlane.f32.xlu0 %v76
    %v78 = vpop.xlane.xlu0 %77
    %v79 = vadd.f32 %v78, 29.406033
    %v81 = vlaneseq
    %v82 = vand.u32 %v81, 127
    %v83 = vlaneseq
    %v84 = vshrl.u32 %v83, 7
    %v85 = vsub.s32 %v82, %v84
    %v86 = vrot.slane %v79, %v85
    %vm87 = vcmask 1042434
    %v88 = vsel %vm87, %v86, %v86
    %vm89 = vcmask 1043459
    %v90 = vsel %vm89, %v86, %v88
    %vm91 = vcmask 1044484
    %v92 = vsel %vm91, %v86, %v90
    %vm93 = vcmask 1045509
    %v94 = vsel %vm93, %v86, %v92
    %vm95 = vcmask 1046534
    %v96 = vsel %vm95, %v86, %v94
    %vm97 = vcmask 1047559
    %v98 = vsel %vm97, %v86, %v96
    %vm100 = vcmask 261120
    %v102 = vsel %vm100, %v64, 0
    %v105 = vsel %vm100, %v71, 0
    %107 = vmatprep.subr.mxu0 0.0
    %108 = vmatpush1.xpose.msra.mxu0 %v105
    %109 = vmatprep.subr.mxu0 0.0
    %110 = vmatpush1.xpose.msra.mxu0 0.0
    %111 = vmatprep.subr.mxu0 0.0
    %112 = vmatpush1.xpose.msra.mxu0 0.0
    %113 = vmatprep.subr.mxu0 0.0
    %114 = vmatpush1.xpose.msra.mxu0 0.0
    %115 = vmatprep.subr.mxu0 0.0
    %116 = vmatpush1.xpose.msra.mxu0 0.0
    %117 = vmatprep.subr.mxu0 0.0
    %118 = vmatpush1.xpose.msra.mxu0 0.0
    %119 = vmatprep.subr.mxu0 0.0
    %120 = vmatpush1.xpose.msra.mxu0 0.0
    %121 = vmatprep.subr.mxu0 0.0
    %122 = vmatpush1.xpose.msra.mxu0 0.0
    %123 = vmatprep.subr.mxu0 0.0
    %124 = vmatpush1.xpose.msra.mxu0 0.0
    %125 = vmatprep.subr.mxu0 0.0
    %126 = vmatpush1.xpose.msra.mxu0 0.0
    %127 = vmatprep.subr.mxu0 0.0
    %128 = vmatpush1.xpose.msra.mxu0 0.0
    %129 = vmatprep.subr.mxu0 0.0
    %130 = vmatpush1.xpose.msra.mxu0 0.0
    %131 = vmatprep.subr.mxu0 0.0
    %132 = vmatpush1.xpose.msra.mxu0 0.0
    %133 = vmatprep.subr.mxu0 0.0
    %134 = vmatpush1.xpose.msra.mxu0 0.0
    %135 = vmatprep.subr.mxu0 0.0
    %136 = vmatpush1.xpose.msra.mxu0 0.0
    %137 = vmatprep.subr.mxu0 0.0
    %138 = vmatpush1.xpose.msra.mxu0 0.0
    %139 = vmatprep.subr.mxu0 0.0
    %140 = vmatpush1.xpose.msra.mxu0 0.0
    %141 = vmatprep.subr.mxu0 0.0
    %142 = vmatpush1.xpose.msra.mxu0 0.0
    %143 = vmatprep.subr.mxu0 0.0
    %144 = vmatpush1.xpose.msra.mxu0 0.0
    %145 = vmatprep.subr.mxu0 0.0
    %146 = vmatpush1.xpose.msra.mxu0 0.0
    %147 = vmatprep.subr.mxu0 0.0
    %148 = vmatpush1.xpose.msra.mxu0 0.0
    %149 = vmatprep.subr.mxu0 0.0
    %150 = vmatpush1.xpose.msra.mxu0 0.0
    %151 = vmatprep.subr.mxu0 0.0
    %152 = vmatpush1.xpose.msra.mxu0 0.0
    %153 = vmatprep.subr.mxu0 0.0
    %154 = vmatpush1.xpose.msra.mxu0 0.0
    %155 = vmatprep.subr.mxu0 0.0
    %156 = vmatpush1.xpose.msra.mxu0 0.0
    %157 = vmatprep.subr.mxu0 0.0
    %158 = vmatpush1.xpose.msra.mxu0 0.0
    %159 = vmatprep.subr.mxu0 0.0
    %160 = vmatpush1.xpose.msra.mxu0 0.0
    %161 = vmatprep.subr.mxu0 0.0
    %162 = vmatpush1.xpose.msra.mxu0 0.0
    %163 = vmatprep.subr.mxu0 0.0
    %164 = vmatpush1.xpose.msra.mxu0 0.0
    %165 = vmatprep.subr.mxu0 0.0
    %166 = vmatpush1.xpose.msra.mxu0 0.0
    %167 = vmatprep.subr.mxu0 0.0
    %168 = vmatpush1.xpose.msra.mxu0 0.0
    %169 = vmatprep.subr.mxu0 0.0
    %170 = vmatpush1.xpose.msra.mxu0 0.0
    %171 = vmatprep.mubr.f32.mxu0 0.0
    %172 = vmatmul.mubr.f32.gmra.mrb[0].mxu0 %v102
    %v173 = vpop.f32.mrb[0].mxu0
    %v174 = vadd.f32 %v98, %v173
    %v175 = vpop.f32.mrb[0].mxu0
    %176 = vdwg.mxu0
    %v177 = vmul.f32 %v174, -0.5
    %vm178 = vcmask 64512
    %v179 = vsel %vm178, %v177, -inf
    %180 = vmax.xlane.f32.xlu0 %v179
    %v181 = vpop.xlane.xlu0 %180
    %v182 = vsub.f32 %v177, %v181
    %v183 = vmul.f32 %v182, 1.442695
    %v184 = vpow.pop %v183
    %185 = vst.msk [vmem:[#allocation8] sm:$0xff] %vm178, %v184
    %v186 = vsel %vm178, %v184, 0.0
    %187 = vadd.xlane.f32.xlu0 %v186
    %v188 = vpop.xlane.xlu0 %187
    %v189 = vlog2.pop %v188
    %v190 = vmul.f32 %v189, 0.6931472
    %vm191 = vcmask 7168
    %192 = vst.msk [vmem:[%s4] sm:$0xff] %vm191, %v190
    // Predicated region
    $region26: #{tpu_custom_call.1} parent=1 // pred_check
      _
    $region27: #{tpu_custom_call.1} parent=1 // pred_check_branch
      %194 = sbr.rel (0) target = $region29
    $region28: #{tpu_custom_call.1} parent=1 // pred_region
      %s196 = ssub.s32 128, 128
      %197 = vsyncadd [#allocation4], %s196
      %s199 = sshll.u32 [#allocation8], 4
      %s200 = int_to_ptr.vmem [resolvable:$true] %s199
      %202 = dma.vmem_to_hbm [thread:$0]  %s200, 128, %s3, [#allocation4]
    $region29: #{tpu_custom_call.1} parent=1 // pred_fallthru
      _
    // Predicated region
    $region30: #{tpu_custom_call.1} parent=1 // pred_check
      _
    $region31: #{tpu_custom_call.1} parent=1 // pred_check_branch
      %204 = sbr.rel (0) target = $region33
    $region32: #{tpu_custom_call.1} parent=1 // pred_region
      _
    $region33: #{tpu_custom_call.1} parent=1 // pred_fallthru
      _
    // Predicated region
    $region34: #{tpu_custom_call.1} parent=1 // pred_check
      _
    $region35: #{tpu_custom_call.1} parent=1 // pred_check_branch
      %206 = sbr.rel (0) target = $region37
    $region36: #{tpu_custom_call.1} parent=1 // pred_region
      %207 = dma.done [#allocation4], 128
    $region37: #{tpu_custom_call.1} parent=1 // pred_fallthru
      _
    // Predicated region
    $region38: #{tpu_custom_call.1} parent=1 // pred_check
      _
    $region39: #{tpu_custom_call.1} parent=1 // pred_check_branch
      %209 = sbr.rel (0) target = $region41
    $region40: #{tpu_custom_call.1} parent=1 // pred_region
      _
    $region41: #{tpu_custom_call.1} parent=1 // pred_fallthru
      _
    %210 = vsyncpa [#allocation3], 1
    %211 = vsyncpa [#allocation6], 1
    %212 = vsyncpa [#allocation4], 1

</llo_original>
